<compile_context>
chip_gen: v5e
topology: v5e:2x2
jax: 0.10.0
libtpu: 0.0.40
codegen_flags: <defaults>
</compile_context>

<pallas_src>
import functools

import jax
import jax.numpy as jnp
from jax.experimental import pallas as pl
from jax.experimental.pallas import tpu as pltpu

_LANE = 128


def _smooth_maxpool_kernel(x_ref, o_ref, *, kernel_size, stride, out_len,
                           temperature):
    """x_ref: (L, TR) VMEM tile, o_ref: (out_L, TR) VMEM tile."""
    inv_t = 1.0 / temperature

    def window(j):
        # Strided sublane slice: rows j, j+stride, ..., j+(out_len-1)*stride.
        return x_ref[pl.ds(j, out_len, stride=stride), :].astype(jnp.float32)

    # Pass 1: running window max (live set: m + the current slice only).
    m = window(0)
    for j in range(1, kernel_size):
        m = jnp.maximum(m, window(j))

    # Pass 2: re-read the slices and accumulate the max-shifted exp sum.
    # Every exp argument is <= 0, so no overflow even with tiny temperatures;
    # at least one term is exp(0) = 1, so the log below is always finite.
    s = jnp.exp((window(0) - m) * inv_t)
    for j in range(1, kernel_size):
        s = s + jnp.exp((window(j) - m) * inv_t)

    # logsumexp(x / T) * T  ==  m + T * log( sum_j exp((x_j - m) / T) )
    o_ref[...] = (m + temperature * jnp.log(s)).astype(o_ref.dtype)


def smooth_max_pool_1d_lr(x_lr, kernel_size, stride, temperature=0.01, *,
                          lane_tile=None):
    """Transpose-free core.  x_lr: (L, R) with R = B*C on the lane axis.

    Returns (out_L, R) in the same layout.
    """
    length, r = x_lr.shape
    out_len = (length - kernel_size) // stride + 1
    itemsize = jnp.dtype(x_lr.dtype).itemsize

    if lane_tile is None:
        # Size the R tile from a ~8 MiB double-buffer budget (2x input tile +
        # 2x output tile), capped at 1024 lanes.  Fits v5e's 16 MiB default
        # scoped VMEM and leaves ample headroom on v7x's 64 MiB physical VMEM.
        budget = 8 * 1024 * 1024
        per_lane = 2 * (length + out_len) * itemsize
        lane_tile = (budget // per_lane) // _LANE * _LANE
        lane_tile = int(max(_LANE, min(1024, lane_tile)))
    # TODO(synk): for very large L the (L, lane_tile) block itself outgrows
    # VMEM; that case needs a halo'd out_L tiling (overlapping input windows of
    # tile_out*stride + (K - stride) rows via manual DMA), not implemented here.

    r128 = pl.cdiv(r, _LANE) * _LANE
    tr = int(min(lane_tile, r128))
    r_pad = pl.cdiv(r, tr) * tr
    if r_pad != r:
        # Keeps every block full and lane-dense (unmasked stores).  Production
        # shapes typically have R as a multiple of 128, so this is a no-op.
        x_lr = jnp.pad(x_lr, ((0, 0), (0, r_pad - r)))

    kernel = functools.partial(
        _smooth_maxpool_kernel,
        kernel_size=kernel_size,
        stride=stride,
        out_len=out_len,
        temperature=temperature,
    )

    out = pl.pallas_call(
        kernel,
        out_shape=jax.ShapeDtypeStruct((out_len, r_pad), x_lr.dtype),
        grid=(r_pad // tr,),
        in_specs=[pl.BlockSpec((length, tr), lambda i: (0, i))],
        out_specs=pl.BlockSpec((out_len, tr), lambda i: (0, i)),
        compiler_params=pltpu.CompilerParams(
            # R blocks are independent -> megacore / v7x 2-TC sharding.
            dimension_semantics=("parallel",),
            vmem_limit_bytes=32 * 1024 * 1024,
        ),
    )(x_lr)

    return out[:, :r] if r_pad != r else out


def smooth_max_pool_1d(x, kernel_size, stride, temperature=0.01, *,
                       lane_tile=None):
    """Matches SmoothMaxPool1D.forward for x of shape (B, C, L)."""
    b, c, length = x.shape
    out_len = (length - kernel_size) // stride + 1
    r = b * c

    # Layout glue only: (B, C, L) -> (L, B*C).  In a real model, keep the
    # activations in (L, R) layout and call smooth_max_pool_1d_lr directly to
    # avoid these two extra HBM passes.
    xt = x.reshape(r, length).T  # (L, R)
    out_t = smooth_max_pool_1d_lr(xt, kernel_size, stride, temperature,
                                  lane_tile=lane_tile)  # (out_L, R)
    return out_t.T.reshape(b, c, out_len)


def _reference(x, kernel_size, stride, temperature=0.01):
    """Pure-JAX reference replicating torch.unfold + logsumexp."""
    b, c, length = x.shape
    out_len = (length - kernel_size) // stride + 1
    idx = jnp.arange(out_len)[:, None] * stride + jnp.arange(kernel_size)[None, :]
    unfolded = x[:, :, idx]  # (B, C, out_L, K)
    return jax.scipy.special.logsumexp(unfolded / temperature, axis=-1) * temperature


if __name__ == "__main__":
    # Module hyper-parameters (from SmoothMaxPool1D.__init__).
    KERNEL_SIZE = 3
    STRIDE = 2
    TEMPERATURE = 0.01

    # Small deterministic input: (batch=2, channels=8, length=16).
    key = jax.random.PRNGKey(0)
    x = jax.random.normal(key, (2, 8, 16), dtype=jnp.float32)

    out = smooth_max_pool_1d(x, KERNEL_SIZE, STRIDE, temperature=TEMPERATURE)
    out = jax.block_until_ready(out)

    expected = _reference(x, KERNEL_SIZE, STRIDE, temperature=TEMPERATURE)
    assert out.shape == expected.shape, (out.shape, expected.shape)
    assert jnp.allclose(out, expected, rtol=1e-5, atol=1e-5), (
        "Pallas output mismatch vs reference")

    print("KERNEL_OK")
</pallas_src>

<mosaic_0001>
module attributes {stable_mosaic.version = 11 : i64} {
  func.func @_smooth_maxpool_kernel(%arg0: i32, %arg1: memref<16x128xf32, #tpu.memory_space<vmem>>, %arg2: memref<7x128xf32, #tpu.memory_space<vmem>>) attributes {dimension_semantics = [#tpu.dimension_semantics<parallel>], iteration_bounds = array<i64: 1>, scalar_prefetch = 0 : i64, scratch_operands = 0 : i64, tpu.core_type = #tpu.core_type<tc>, window_params = [{transform_indices = @transform_0, window_bounds = array<i64: 16, 128>}, {transform_indices = @transform_1, window_bounds = array<i64: 7, 128>}]} {
    %c0 = arith.constant 0 : index
    %c0_0 = arith.constant 0 : index
    %0 = tpu.strided_load %arg1[%c0, %c0_0] {strides = array<i32: 2, 1>} : memref<16x128xf32, #tpu.memory_space<vmem>>, vector<7x128xf32>
    %c1 = arith.constant 1 : index
    %c0_1 = arith.constant 0 : index
    %1 = tpu.strided_load %arg1[%c1, %c0_1] {strides = array<i32: 2, 1>} : memref<16x128xf32, #tpu.memory_space<vmem>>, vector<7x128xf32>
    %2 = arith.maximumf %0, %1 : vector<7x128xf32>
    %c2 = arith.constant 2 : index
    %c0_2 = arith.constant 0 : index
    %3 = tpu.strided_load %arg1[%c2, %c0_2] {strides = array<i32: 2, 1>} : memref<16x128xf32, #tpu.memory_space<vmem>>, vector<7x128xf32>
    %4 = arith.maximumf %2, %3 : vector<7x128xf32>
    %c0_3 = arith.constant 0 : index
    %c0_4 = arith.constant 0 : index
    %5 = tpu.strided_load %arg1[%c0_3, %c0_4] {strides = array<i32: 2, 1>} : memref<16x128xf32, #tpu.memory_space<vmem>>, vector<7x128xf32>
    %6 = arith.subf %5, %4 : vector<7x128xf32>
    %cst = arith.constant 1.000000e+02 : f32
    %7 = vector.broadcast %cst : f32 to vector<7x128xf32>
    %8 = arith.mulf %6, %7 : vector<7x128xf32>
    %9 = math.exp %8 : vector<7x128xf32>
    %c1_5 = arith.constant 1 : index
    %c0_6 = arith.constant 0 : index
    %10 = tpu.strided_load %arg1[%c1_5, %c0_6] {strides = array<i32: 2, 1>} : memref<16x128xf32, #tpu.memory_space<vmem>>, vector<7x128xf32>
    %11 = arith.subf %10, %4 : vector<7x128xf32>
    %cst_7 = arith.constant 1.000000e+02 : f32
    %12 = vector.broadcast %cst_7 : f32 to vector<7x128xf32>
    %13 = arith.mulf %11, %12 : vector<7x128xf32>
    %14 = math.exp %13 : vector<7x128xf32>
    %15 = arith.addf %9, %14 : vector<7x128xf32>
    %c2_8 = arith.constant 2 : index
    %c0_9 = arith.constant 0 : index
    %16 = tpu.strided_load %arg1[%c2_8, %c0_9] {strides = array<i32: 2, 1>} : memref<16x128xf32, #tpu.memory_space<vmem>>, vector<7x128xf32>
    %17 = arith.subf %16, %4 : vector<7x128xf32>
    %cst_10 = arith.constant 1.000000e+02 : f32
    %18 = vector.broadcast %cst_10 : f32 to vector<7x128xf32>
    %19 = arith.mulf %17, %18 : vector<7x128xf32>
    %20 = math.exp %19 : vector<7x128xf32>
    %21 = arith.addf %15, %20 : vector<7x128xf32>
    %22 = math.log %21 : vector<7x128xf32>
    %cst_11 = arith.constant 0.00999999977 : f32
    %23 = vector.broadcast %cst_11 : f32 to vector<7x128xf32>
    %24 = arith.mulf %23, %22 : vector<7x128xf32>
    %25 = arith.addf %4, %24 : vector<7x128xf32>
    %c0_12 = arith.constant 0 : index
    %c0_13 = arith.constant 0 : index
    %26 = vector.load %arg2[%c0_12, %c0_13] : memref<7x128xf32, #tpu.memory_space<vmem>>, vector<7x128xf32>
    tpu.vector_store %arg2[%c0_12, %c0_13], %25 {strides = array<i32>} : memref<7x128xf32, #tpu.memory_space<vmem>>, vector<7x128xf32>,
    return
  }
  func.func @transform_0(%arg0: i32) -> (i32, i32) {
    %c0_i32 = arith.constant 0 : i32
    %c0_i32_0 = arith.constant 0 : i32
    return %c0_i32, %arg0 : i32, i32
  }
  func.func @transform_1(%arg0: i32) -> (i32, i32) {
    %c0_i32 = arith.constant 0 : i32
    %c0_i32_0 = arith.constant 0 : i32
    return %c0_i32, %arg0 : i32, i32
  }
}

</mosaic_0001>

<llo_original>
// kernel: tpu_custom_call.1
$region0: #{tpu_custom_call.1}
  #allocation0 [shape = 'u32[]', space=smem, size = 0x4, offset = 0x4, fixed_abs, tag = 'smem constant byte address 0x4 - core index']
  #allocation1 [shape = 'u32[72,128]{1,0:T(1,128)}', space=vmem, size = 0x9000, scoped, tag = 'internal scratch']
  %s0 = inlined_call_operand.hbm [shape: f32[16,128], index: 0, kind: input, shape index: {}]
  %s1 = inlined_call_operand.hbm [shape: f32[7,128], index: 1, kind: output, shape index: {}]
  %s2 = sld [smem:[#allocation0]]
  $region18: #{tpu_custom_call.1} parent=0
    _
  %s4 = ssub.s32 1, %s2
  %s5 = scalar_select 0, %s4, %s2
  $region1: #{tpu_custom_call.1} parent=0
    #allocation2 [shape = 'u8[8192]{0}', space=vmem, size = 0x2000, scoped, tag = 'input window, operand 0, single buffered']
    #allocation3 [shape = 's32[1]{0}', space=sflag, size = 0x4, scoped, tag = 'scoped memory for tpu_custom_call.1']
    #allocation4 [shape = 's32[1]{0}', space=sflag, size = 0x4, scoped, tag = 'scoped memory for tpu_custom_call.1']
    #allocation5 [shape = 'u8[4096]{0}', space=vmem, size = 0x1000, scoped, tag = 'output window, operand 0, single buffered']
    %6 = vsyncpa [#allocation3], 0
    %7 = vsyncpa [#allocation4], 0
    // Predicated region
    $region2: #{tpu_custom_call.1} parent=1 // pred_check
      _
    $region3: #{tpu_custom_call.1} parent=1 // pred_check_branch
      %9 = sbr.rel (0) target = $region5
    $region4: #{tpu_custom_call.1} parent=1 // pred_region
      %11 = vsyncadd [#allocation3], 0
      %s12 = sshll.u32 %s0, 4
      %s13 = int_to_ptr.hbm [resolvable:$true] %s12
      %s14 = sshll.u32 [#allocation2], 4
      %s15 = int_to_ptr.vmem [resolvable:$true] %s14
      %20 = dma.hbm_to_vmem [thread:$0]  %s13, 256, %s15, [#allocation3], 128, 128, 8
    $region5: #{tpu_custom_call.1} parent=1 // pred_fallthru
      _
    // Predicated region
    $region6: #{tpu_custom_call.1} parent=1 // pred_check
      _
    $region7: #{tpu_custom_call.1} parent=1 // pred_check_branch
      %22 = sbr.rel (0) target = $region9
    $region8: #{tpu_custom_call.1} parent=1 // pred_region
      %24 = dma.done [#allocation3], 256
    $region9: #{tpu_custom_call.1} parent=1 // pred_fallthru
      _
    %v25 = vld [vmem:[#allocation2] ss:$2 sm:$0x7f]
    %s26 = scalar_lea.vmem [#allocation2], 1
    %v27 = vld [vmem:[%s26] ss:$2 sm:$0x7f]
    %v28 = vmax.f32 %v25, %v27
    %s29 = scalar_lea.vmem [#allocation2], 2
    %v30 = vld [vmem:[%s29] ss:$2 sm:$0x7f]
    %v31 = vmax.f32 %v28, %v30
    %v32 = vsub.f32 %v25, %v31
    %v33 = vmul.f32 %v32, 100.0
    %v34 = vmul.f32 %v33, 1.442695
    %v35 = vpow.pop %v34
    %v36 = vsub.f32 %v27, %v31
    %v37 = vmul.f32 %v36, 100.0
    %v38 = vmul.f32 %v37, 1.442695
    %v39 = vpow.pop %v38
    %v40 = vadd.f32 %v35, %v39
    %v41 = vsub.f32 %v30, %v31
    %v42 = vmul.f32 %v41, 100.0
    %v43 = vmul.f32 %v42, 1.442695
    %v44 = vpow.pop %v43
    %v45 = vadd.f32 %v40, %v44
    %v46 = vlog2.pop %v45
    %v47 = vmul.f32 %v46, 0.6931472
    %v48 = vmul.f32 %v47, 0.01
    %v49 = vadd.f32 %v31, %v48
    %50 = vst [vmem:[#allocation5] sm:$0x7f] %v49
    // Predicated region
    $region10: #{tpu_custom_call.1} parent=1 // pred_check
      _
    $region11: #{tpu_custom_call.1} parent=1 // pred_check_branch
      %52 = sbr.rel (0) target = $region13
    $region12: #{tpu_custom_call.1} parent=1 // pred_region
      %54 = vsyncadd [#allocation4], 0
      %s56 = sshll.u32 [#allocation5], 4
      %s57 = int_to_ptr.vmem [resolvable:$true] %s56
      %s58 = sshll.u32 %s1, 4
      %s59 = int_to_ptr.hbm [resolvable:$true] %s58
      %61 = dma.vmem_to_hbm [thread:$0]  %s57, 128, %s59, [#allocation4]
    $region13: #{tpu_custom_call.1} parent=1 // pred_fallthru
      _
    // Predicated region
    $region14: #{tpu_custom_call.1} parent=1 // pred_check
      _
    $region15: #{tpu_custom_call.1} parent=1 // pred_check_branch
      %63 = sbr.rel (0) target = $region17
    $region16: #{tpu_custom_call.1} parent=1 // pred_region
      %65 = dma.done [#allocation4], 128
    $region17: #{tpu_custom_call.1} parent=1 // pred_fallthru
      _
    %66 = vsyncpa [#allocation3], 1
    %67 = vsyncpa [#allocation4], 1

</llo_original>
